<compile_context>
chip_gen: v7x
topology: tpu7x:2x2x1
jax: 0.10.0
libtpu: 0.0.40
codegen_flags: <defaults>
</compile_context>

<pallas_src>
import functools

import jax
import jax.numpy as jnp
import numpy as np
from jax.experimental import pallas as pl
from jax.experimental.pallas import tpu as pltpu

LANE = 128
SUBLANE_I8 = 32          # native int8 tile is (32, 128)


def _round_up(x, m):
    return ((x + m - 1) // m) * m


def _drop_edge_mask_kernel_hw(seed_ref, mask_ref, *, thresh32):
    """HW-PRNG variant (real TPU).

    seed_ref: SMEM (1,) int32.  mask_ref: VMEM (tile_rows, 128) int8.
    Writes 1 where uniform32 > p*2^32 (keep), 0 where dropped.  Padded lanes
    beyond num_edges hold arbitrary 0/1 values; the wrapper slices them away.
    """
    # Seed per (seed, tile) so every grid step draws an independent stream.
    pltpu.prng_seed(seed_ref[0], pl.program_id(0))
    bits = pltpu.bitcast(pltpu.prng_random_bits(mask_ref.shape), jnp.uint32)
    mask_ref[...] = (bits > jnp.uint32(thresh32)).astype(mask_ref.dtype)


def _drop_edge_mask_kernel_hash(seed_ref, local_ref, mask_ref, *, thresh32,
                                tile_elems):
    """Stateless-hash fallback (non-TPU backends / interpret mode).

    local_ref is the tile-invariant pattern (row << 7) | lane kept VMEM
    resident (index_map always (0, 0)).  The tile offset is tile-aligned, so
    `gidx = local ^ offset`, and it is folded with the seed into ONE scalar,
    leaving a single vector XOR + the 5-step mixer + one compare per element.
    """
    i = pl.program_id(0)
    offset = (i * tile_elems).astype(jnp.uint32)
    seed_mixed = seed_ref[0].astype(jnp.uint32) * jnp.uint32(0x9E3779B9)
    x = pltpu.bitcast(local_ref[...], jnp.uint32) ^ (offset ^ seed_mixed)
    x = x ^ (x >> 16)
    x = x * jnp.uint32(0x7FEB352D)
    x = x ^ (x >> 15)
    x = x * jnp.uint32(0x846CA68B)
    x = x ^ (x >> 16)
    mask_ref[...] = (x > jnp.uint32(thresh32)).astype(mask_ref.dtype)


def drop_edge_keep_mask(num_edges, p, seed, *, tile_rows=4096,
                        use_hw_prng=None):
    """Runs the Pallas kernel; returns a bool (num_edges,) keep mask."""
    if use_hw_prng is None:
        use_hw_prng = jax.default_backend() == "tpu"

    rows = max(1, _round_up(num_edges, LANE) // LANE)     # 128-lane rows needed

    # Keep >= 2 grid steps whenever the edge list is big enough to split, so
    # the "parallel" axis can be sharded across v7x's two TensorCores; round
    # to 32 for native int8 tiling.
    two_step_cap = _round_up(max((rows + 1) // 2, 1), SUBLANE_I8)
    tile_rows = max(SUBLANE_I8,
                    min(_round_up(int(tile_rows), SUBLANE_I8), two_step_cap))
    rows_pad = _round_up(rows, tile_rows)
    num_tiles = rows_pad // tile_rows

    # Round-to-nearest threshold: keep iff bits32 > p * 2^32.
    thresh32 = min(max(int(round(float(p) * (1 << 32))), 0), (1 << 32) - 1)

    seed_arr = jnp.asarray(seed, jnp.int32).reshape((1,))

    if use_hw_prng:
        kernel = functools.partial(_drop_edge_mask_kernel_hw,
                                   thresh32=thresh32)
        in_specs = [pl.BlockSpec(memory_space=pltpu.MemorySpace.SMEM)]
        args = (seed_arr,)
    else:
        kernel = functools.partial(_drop_edge_mask_kernel_hash,
                                   thresh32=thresh32,
                                   tile_elems=tile_rows * LANE)
        row = jnp.arange(tile_rows, dtype=jnp.int32)[:, None]
        lane = jnp.arange(LANE, dtype=jnp.int32)[None, :]
        local = (row << 7) | lane                         # tile-invariant pattern
        in_specs = [
            pl.BlockSpec(memory_space=pltpu.MemorySpace.SMEM),
            pl.BlockSpec((tile_rows, LANE), lambda i: (0, 0)),
        ]
        args = (seed_arr, local)

    mask2d = pl.pallas_call(
        kernel,
        grid=(num_tiles,),
        out_shape=jax.ShapeDtypeStruct((rows_pad, LANE), jnp.int8),
        in_specs=in_specs,
        out_specs=pl.BlockSpec((tile_rows, LANE), lambda i: (i, 0)),
        compiler_params=pltpu.CompilerParams(
            dimension_semantics=("parallel",)),
    )(*args)

    # Padded rows past num_edges are unspecified; this slice must stay.
    return mask2d.reshape(-1)[:num_edges].astype(bool)


def drop_edge(ei, seed, *, p, training=True, tile_rows=4096,
              use_hw_prng=None):
    """DropEdge forward (static-shape, fully on-device, jittable).

    Returns (ei_compacted, keep_mask, num_kept) where
      ei_compacted[:, :num_kept] == PyTorch's ei[:, mask > p]
    (remaining columns are zero padding).
    """
    E = ei.shape[1]
    if not training:
        return ei, jnp.ones((E,), dtype=bool), jnp.int32(E)

    keep = drop_edge_keep_mask(E, p, seed, tile_rows=tile_rows,
                               use_hw_prng=use_hw_prng)

    # TODO(synk): the true dynamic output shape of ei[:, mask > p] cannot be
    # produced by a static-shape TPU program; fixed-capacity on-device
    # compaction (cumsum + scatter) + a valid count is the equivalent.
    keep_i32 = keep.astype(jnp.int32)
    num_kept = jnp.sum(keep_i32)
    dest = jnp.cumsum(keep_i32) - 1                       # target column of each kept edge
    dest = jnp.where(keep, dest, E)                       # dropped edges scatter out of range
    compacted = jnp.zeros_like(ei).at[:, dest].set(ei, mode="drop")
    return compacted, keep, num_kept


if __name__ == "__main__":
    key = jax.random.PRNGKey(0)
    num_nodes, E = 64, 300                 # small, non-multiple-of-128 edge count
    ei = jax.random.randint(key, (2, E), 0, num_nodes, dtype=jnp.int32)
    p = 0.3

    # --- training path under jit (HW PRNG on TPU) ---
    fwd = jax.jit(functools.partial(drop_edge, p=p, training=True))
    out, keep, n_kept = fwd(ei, jnp.int32(42))
    jax.block_until_ready((out, keep, n_kept))
    keep_np = np.asarray(keep)
    n = int(n_kept)
    assert keep_np.shape == (E,)
    assert n == int(keep_np.sum())
    assert np.array_equal(np.asarray(out)[:, :n], np.asarray(ei)[:, keep_np])

    # --- larger E, multi-tile grid + drop-rate statistics ---
    E2 = 5000
    ei2 = jax.random.randint(jax.random.PRNGKey(1), (2, E2), 0, num_nodes,
                             dtype=jnp.int32)
    out2, keep2, n_kept2 = drop_edge(ei2, jnp.int32(7), p=p, training=True,
                                     tile_rows=32)
    jax.block_until_ready((out2, keep2, n_kept2))
    keep2_np = np.asarray(keep2)
    assert abs(float(keep2_np.mean()) - (1.0 - p)) < 0.05, float(keep2_np.mean())
    n2 = int(n_kept2)
    assert n2 == int(keep2_np.sum())
    assert np.array_equal(np.asarray(out2)[:, :n2], np.asarray(ei2)[:, keep2_np])

    # --- software-hash fallback path (used when the HW PRNG is unavailable) ---
    out3, keep3, n_kept3 = drop_edge(ei2, jnp.int32(7), p=p, training=True,
                                     tile_rows=64, use_hw_prng=False)
    jax.block_until_ready((out3, keep3, n_kept3))
    keep3_np = np.asarray(keep3)
    assert abs(float(keep3_np.mean()) - (1.0 - p)) < 0.05, float(keep3_np.mean())
    n3 = int(n_kept3)
    assert np.array_equal(np.asarray(out3)[:, :n3], np.asarray(ei2)[:, keep3_np])

    # --- eval path: identity ---
    out_eval, _, n_eval = drop_edge(ei, jnp.int32(42), p=p, training=False)
    jax.block_until_ready(out_eval)
    assert int(n_eval) == E
    assert np.array_equal(np.asarray(out_eval), np.asarray(ei))

    print("KERNEL_OK")
</pallas_src>

<mosaic_0001>
module attributes {stable_mosaic.version = 11 : i64} {
  func.func @_drop_edge_mask_kernel_hash(%arg0: i32, %arg1: memref<1xi32, #tpu.memory_space<smem>>, %arg2: memref<32x128xi32, #tpu.memory_space<vmem>>, %arg3: memref<32x128xi8, #tpu.memory_space<vmem>>) attributes {dimension_semantics = [#tpu.dimension_semantics<parallel>], iteration_bounds = array<i64: 1>, scalar_prefetch = 0 : i64, scratch_operands = 0 : i64, tpu.core_type = #tpu.core_type<tc>, window_params = [{transform_indices = @transform_0, window_bounds = array<i64: 1>}, {pipeline_mode = #tpu.pipeline_mode<synchronous>, transform_indices = @transform_1, window_bounds = array<i64: 32, 128>}, {transform_indices = @transform_2, window_bounds = array<i64: 32, 128>}]} {
    %c4096_i32 = arith.constant 4096 : i32
    %0 = arith.muli %arg0, %c4096_i32 : i32
    %c0 = arith.constant 0 : index
    %1 = memref.load %arg1[%c0] : memref<1xi32, #tpu.memory_space<smem>>
    %c-1640531527_i32 = arith.constant -1640531527 : i32
    %2 = arith.muli %1, %c-1640531527_i32 : i32
    %c0_0 = arith.constant 0 : index
    %c0_1 = arith.constant 0 : index
    %3 = vector.load %arg2[%c0_0, %c0_1] : memref<32x128xi32, #tpu.memory_space<vmem>>, vector<32x128xi32>
    %4 = tpu.bitcast %3 : vector<32x128xi32> -> vector<32x128xi32>
    %5 = arith.xori %0, %2 : i32
    %6 = vector.broadcast %5 : i32 to vector<32x128xi32>
    %7 = arith.xori %4, %6 : vector<32x128xi32>
    %c16_i32 = arith.constant 16 : i32
    %8 = vector.broadcast %c16_i32 : i32 to vector<32x128xi32>
    %9 = arith.shrui %7, %8 : vector<32x128xi32>
    %10 = arith.xori %7, %9 : vector<32x128xi32>
    %c2146121005_i32 = arith.constant 2146121005 : i32
    %11 = vector.broadcast %c2146121005_i32 : i32 to vector<32x128xi32>
    %12 = arith.muli %10, %11 : vector<32x128xi32>
    %c15_i32 = arith.constant 15 : i32
    %13 = vector.broadcast %c15_i32 : i32 to vector<32x128xi32>
    %14 = arith.shrui %12, %13 : vector<32x128xi32>
    %15 = arith.xori %12, %14 : vector<32x128xi32>
    %c-2073254261_i32 = arith.constant -2073254261 : i32
    %16 = vector.broadcast %c-2073254261_i32 : i32 to vector<32x128xi32>
    %17 = arith.muli %15, %16 : vector<32x128xi32>
    %c16_i32_2 = arith.constant 16 : i32
    %18 = vector.broadcast %c16_i32_2 : i32 to vector<32x128xi32>
    %19 = arith.shrui %17, %18 : vector<32x128xi32>
    %20 = arith.xori %17, %19 : vector<32x128xi32>
    %c1288490189_i32 = arith.constant 1288490189 : i32
    %21 = vector.broadcast %c1288490189_i32 : i32 to vector<32x128xi32>
    %22 = arith.cmpi ugt, %20, %21 : vector<32x128xi32>
    %23 = arith.extui %22 : vector<32x128xi1> to vector<32x128xi8>
    %c0_3 = arith.constant 0 : index
    %c0_4 = arith.constant 0 : index
    %24 = vector.load %arg3[%c0_3, %c0_4] : memref<32x128xi8, #tpu.memory_space<vmem>>, vector<32x128xi8>
    tpu.vector_store %arg3[%c0_3, %c0_4], %23 {strides = array<i32>} : memref<32x128xi8, #tpu.memory_space<vmem>>, vector<32x128xi8>,
    return
  }
  func.func @transform_0(%arg0: i32) -> i32 {
    %c0_i32 = arith.constant 0 : i32
    %c0_i32_0 = arith.constant 0 : i32
    return %c0_i32 : i32
  }
  func.func @transform_1(%arg0: i32) -> (i32, i32) {
    %c0_i32 = arith.constant 0 : i32
    %c0_i32_0 = arith.constant 0 : i32
    %c0_i32_1 = arith.constant 0 : i32
    return %c0_i32, %c0_i32_0 : i32, i32
  }
  func.func @transform_2(%arg0: i32) -> (i32, i32) {
    %c0_i32 = arith.constant 0 : i32
    %c0_i32_0 = arith.constant 0 : i32
    return %arg0, %c0_i32 : i32, i32
  }
}

</mosaic_0001>

<llo_original>
// kernel: drop_edge.1
$region0: #{drop_edge.1}
  #allocation0 [shape = 'u32[]', space=smem, size = 0x4, offset = 0x4, fixed_abs, tag = 'smem constant byte address 0x4 - core index']
  #allocation1 [shape = 'u32[144,128]{1,0:T(1,128)}', space=vmem, size = 0x12000, scoped, tag = 'internal scratch']
  #allocation2 [shape = 's32[1]{0:T(128)S(6)}', space=smem, size = 0x200, scoped, tag = 'scoped memory for drop_edge.1']
  %s0 = inlined_call_operand.<no memory space> [shape: s32[1], index: 0, kind: input, shape index: {}]
  %s1 = inlined_call_operand.vmem [shape: s32[32,128], index: 1, kind: input, shape index: {}]
  %s2 = inlined_call_operand.vmem [shape: s8[32,128], index: 2, kind: output, shape index: {}]
  %s3 = sld [smem:[#allocation0]]
  $region18: #{drop_edge.1} parent=0
    _
  %s5 = ssub.s32 1, %s3
  %s6 = scalar_select 0, %s5, %s3
  %7 = sst [smem:[#allocation2]] %s0
  // Predicated region
  $region2: #{drop_edge.1} parent=0 // pred_check
    _
  $region3: #{drop_edge.1} parent=0 // pred_check_branch
    %9 = sbr.rel (0) target = $region5
  $region4: #{drop_edge.1} parent=0 // pred_region
    _
  $region5: #{drop_edge.1} parent=0 // pred_fallthru
    _
  // Predicated region
  $region6: #{drop_edge.1} parent=0 // pred_check
    _
  $region7: #{drop_edge.1} parent=0 // pred_check_branch
    %11 = sbr.rel (0) target = $region9
  $region8: #{drop_edge.1} parent=0 // pred_region
    _
  $region9: #{drop_edge.1} parent=0 // pred_fallthru
    _
  %s14 = smul.u32 0, 4096
  %s15 = sld [smem:[#allocation2]]
  %s16 = smul.u32 %s15, 2654435769
  %v17 = vld [vmem:[%s1] sm:$0xff]
  %v18 = vld [vmem:[%s1 + $0x8] sm:$0xff]
  %v19 = vld [vmem:[%s1 + $0x10] sm:$0xff]
  %v20 = vld [vmem:[%s1 + $0x18] sm:$0xff]
  %s21 = sxor.u32 %s14, %s16
  %v22 = vstv %s21
  %v23 = vxor.u32 %v17, %v22
  %v24 = vxor.u32 %v18, %v22
  %v25 = vxor.u32 %v19, %v22
  %v26 = vxor.u32 %v20, %v22
  %v27 = vshrl.u32 %v23, 16
  %v28 = vshrl.u32 %v24, 16
  %v29 = vshrl.u32 %v25, 16
  %v30 = vshrl.u32 %v26, 16
  %v31 = vxor.u32 %v23, %v27
  %v32 = vxor.u32 %v24, %v28
  %v33 = vxor.u32 %v25, %v29
  %v34 = vxor.u32 %v26, %v30
  %v35 = vmul.u32 %v31, 2146121005
  %v36 = vmul.u32 %v32, 2146121005
  %v37 = vmul.u32 %v33, 2146121005
  %v38 = vmul.u32 %v34, 2146121005
  %v39 = vshrl.u32 %v35, 15
  %v40 = vshrl.u32 %v36, 15
  %v41 = vshrl.u32 %v37, 15
  %v42 = vshrl.u32 %v38, 15
  %v43 = vxor.u32 %v35, %v39
  %v44 = vxor.u32 %v36, %v40
  %v45 = vxor.u32 %v37, %v41
  %v46 = vxor.u32 %v38, %v42
  %v47 = vmul.u32 %v43, 2221713035
  %v48 = vmul.u32 %v44, 2221713035
  %v49 = vmul.u32 %v45, 2221713035
  %v50 = vmul.u32 %v46, 2221713035
  %v51 = vshrl.u32 %v47, 16
  %v52 = vshrl.u32 %v48, 16
  %v53 = vshrl.u32 %v49, 16
  %v54 = vshrl.u32 %v50, 16
  %v55 = vxor.u32 %v47, %v51
  %v56 = vxor.u32 %v48, %v52
  %v57 = vxor.u32 %v49, %v53
  %v58 = vxor.u32 %v50, %v54
  %vm59 = vcmp.gt.u32.totalorder %v55, 1288490189
  %vm60 = vcmp.gt.u32.totalorder %v56, 1288490189
  %vm61 = vcmp.gt.u32.totalorder %v57, 1288490189
  %vm62 = vcmp.gt.u32.totalorder %v58, 1288490189
  %vm63 = vmpackc.low %vm60, %vm59
  %vm64 = vmpackc.low %vm62, %vm61
  %vm65 = vmpackc.even %vm64, %vm63
  %v66 = vsel %vm65, 16843009, 0
  %v67 = vunpack.c.0.s8 %v66
  %v68 = vunpack.c.1.s8 %v66
  %v69 = vunpack.c.2.s8 %v66
  %v70 = vunpack.c.3.s8 %v66
  %v71 = vpack.c.b16 %v67, %v67
  %v72 = vpack.c.b8 %v71, %v71
  %v73 = vpack.c.b16 %v68, %v68
  %v74 = vpack.c.b8 %v73, %v73
  %v75 = vpack.c.b16 %v69, %v69
  %v76 = vpack.c.b8 %v75, %v75
  %v77 = vpack.c.b16 %v70, %v70
  %v78 = vpack.c.b8 %v77, %v77
  %79 = vst [vmem:[%s2] sm:$0x3] %v72
  %80 = vst [vmem:[%s2 + $0x2] sm:$0x3] %v74
  %81 = vst [vmem:[%s2 + $0x4] sm:$0x3] %v76
  %82 = vst [vmem:[%s2 + $0x6] sm:$0x3] %v78
  // Predicated region
  $region10: #{drop_edge.1} parent=0 // pred_check
    _
  $region11: #{drop_edge.1} parent=0 // pred_check_branch
    %84 = sbr.rel (0) target = $region13
  $region12: #{drop_edge.1} parent=0 // pred_region
    _
  $region13: #{drop_edge.1} parent=0 // pred_fallthru
    _
  // Predicated region
  $region14: #{drop_edge.1} parent=0 // pred_check
    _
  $region15: #{drop_edge.1} parent=0 // pred_check_branch
    %86 = sbr.rel (0) target = $region17
  $region16: #{drop_edge.1} parent=0 // pred_region
    _
  $region17: #{drop_edge.1} parent=0 // pred_fallthru
    _

</llo_original>
